<compile_context>
chip_gen: v7x
topology: tpu7x:2x2x1
jax: 0.10.0
libtpu: 0.0.40
codegen_flags: <defaults>
</compile_context>

<pallas_src>
import math

import jax
import jax.numpy as jnp
from jax.experimental import pallas as pl
from jax.experimental.pallas import tpu as pltpu


# -----------------------------------------------------------------------------
# VMEM budgeting / tile selection
# -----------------------------------------------------------------------------
_VMEM_TILE_BUDGET = 24 * 1024 * 1024   # conservative: tiles + weights budget
_VMEM_LIMIT_BYTES = 32 * 1024 * 1024   # explicit scoped limit (safe on v7x too)


def _max_tile_rows(D, H, TE, ret_pred_x):
    """Largest batch tile whose double-buffered footprint fits the budget."""
    in_row = 2 * (D * 4 + D * 4 + 4 * 4 + TE * 2)            # x0, noise, scal, temb
    out_row = 2 * (4 + (2 * D * 4 if ret_pred_x else 0))     # unred (+ x, model_out)
    weights = (D * H + TE * H + H * D) * 2 + (H + D) * 4     # bf16 W + f32 b
    rows = (_VMEM_TILE_BUDGET - weights) // (in_row + out_row)
    return max(16, (rows // 16) * 16)


def _choose_tile(B, block_batch, D, H, TE, ret_pred_x):
    """Batch tile: multiple of 16 (bf16 temb stream), VMEM-capped, prefers a
    divisor of B (no jnp.pad copies) and >= 2 grid steps (v7x dual-TC)."""
    cap = min(block_batch, _max_tile_rows(D, H, TE, ret_pred_x), B)
    cap = (cap // 16) * 16
    if cap <= 0:
        return 16                       # tiny batch: one padded tile
    if 2 * cap > B and B >= 32:
        cap = max(16, (B // 2) // 16 * 16)
    for cand in range(cap, 15, -16):    # prefer a tile that divides B exactly
        if B % cand == 0:
            return cand
    return cap                          # fallback: pad the tail tile


# -----------------------------------------------------------------------------
# Pallas kernels: one batch tile per grid step
# -----------------------------------------------------------------------------
def _denoiser_and_loss(x0, x, p2, temb, w1_ref, wt_ref, b1_ref, w2_ref, b2_ref):
    """2-layer MLP denoiser (the wrapped `self.model(x, t)`) + p2-weighted MSE.

    MXU matmuls in bf16 with f32 accumulation; elementwise math stays f32.
    """
    # additive time-embedding projection (K = temb_dim): rides in MXU slack.
    tadd = jnp.dot(temb, wt_ref[...], preferred_element_type=jnp.float32) + b1_ref[...]
    h = jnp.dot(x.astype(jnp.bfloat16), w1_ref[...],
                preferred_element_type=jnp.float32) + tadd
    h = jnp.maximum(h, 0.0)
    out = jnp.dot(h.astype(jnp.bfloat16), w2_ref[...],
                  preferred_element_type=jnp.float32) + b2_ref[...]

    # loss (objective == 'pred_x0'): mse(model_out, x_start) * p2[t]
    loss_elt = (out - x0) ** 2 * p2                                  # [TB, D] f32
    # Lane-dense per-row mean: reduce over D with a tiny MXU dot so the result
    # is produced already laid out along lanes ([1, TB]).
    ones_row = jnp.ones((1, loss_elt.shape[1]), jnp.float32)
    loss_row = jnp.einsum('rd,td->rt', ones_row, loss_elt,
                          preferred_element_type=jnp.float32)
    loss_row = loss_row * (1.0 / loss_elt.shape[1])                  # [1, TB]
    return out, loss_row


def _fwd_kernel_full(x0_ref, noise_ref, scal_ref, temb_ref,
                     w1_ref, wt_ref, b1_ref, w2_ref, b2_ref,
                     xnoised_ref, modelout_ref, unred_ref):
    x0 = x0_ref[...]
    sc = scal_ref[...]                               # cols: sqrt_ac, sqrt_1m_ac, p2
    # q_sample: x = sqrt(ac[t]) * x0 + sqrt(1 - ac[t]) * noise   (f32)
    x = sc[:, 0:1] * x0 + sc[:, 1:2] * noise_ref[...]
    xnoised_ref[...] = x
    out, loss_row = _denoiser_and_loss(x0, x, sc[:, 2:3], temb_ref[...],
                                       w1_ref, wt_ref, b1_ref, w2_ref, b2_ref)
    modelout_ref[...] = out
    unred_ref[...] = loss_row[None]                  # (1, 1, TB), lane-dense


def _fwd_kernel_loss_only(x0_ref, noise_ref, scal_ref, temb_ref,
                          w1_ref, wt_ref, b1_ref, w2_ref, b2_ref,
                          unred_ref):
    x0 = x0_ref[...]
    sc = scal_ref[...]
    x = sc[:, 0:1] * x0 + sc[:, 1:2] * noise_ref[...]
    _, loss_row = _denoiser_and_loss(x0, x, sc[:, 2:3], temb_ref[...],
                                     w1_ref, wt_ref, b1_ref, w2_ref, b2_ref)
    unred_ref[...] = loss_row[None]


# -----------------------------------------------------------------------------
# Schedule / model glue (plain JAX)
# -----------------------------------------------------------------------------
def cosine_beta_schedule(timesteps, s=0.008):
    steps = timesteps + 1
    x = jnp.linspace(0.0, float(timesteps), steps, dtype=jnp.float32)
    alphas_cumprod = jnp.cos(((x / timesteps) + s) / (1 + s) * math.pi * 0.5) ** 2
    alphas_cumprod = alphas_cumprod / alphas_cumprod[0]
    betas = 1.0 - (alphas_cumprod[1:] / alphas_cumprod[:-1])
    return jnp.clip(betas, 0.0, 0.999)


def sinusoidal_time_embedding(t, dim):
    half = dim // 2
    denom = max(half - 1, 1)
    freqs = jnp.exp(-math.log(10000.0) * jnp.arange(half, dtype=jnp.float32) / denom)
    args = t.astype(jnp.float32)[:, None] * freqs[None, :]
    return jnp.concatenate([jnp.sin(args), jnp.cos(args)], axis=-1)


class DiffusionModelVectorUncondPallas:
    """objective='pred_x0', cosine betas, l2 loss, p2 gamma=0."""

    def __init__(self, dim, hidden, temb_dim, *, timesteps=1000,
                 p2_loss_weight_gamma=0.0, p2_loss_weight_k=1.0,
                 key=jax.random.PRNGKey(0)):
        self.dim, self.hidden, self.temb_dim = dim, hidden, temb_dim
        self.num_timesteps = timesteps

        betas = cosine_beta_schedule(timesteps)
        alphas = 1.0 - betas
        ac = jnp.cumprod(alphas)
        self.sqrt_alphas_cumprod = jnp.sqrt(ac)
        self.sqrt_one_minus_alphas_cumprod = jnp.sqrt(1.0 - ac)
        self.p2_loss_weight = (
            p2_loss_weight_k + ac / (1.0 - ac)) ** (-p2_loss_weight_gamma)

        # deterministic 2-layer MLP denoiser (the wrapped `self.model`);
        # weights stored bf16 for the MXU (deliberate numerics tradeoff),
        # biases f32.
        k1, k2, k3 = jax.random.split(key, 3)
        self.W1 = (jax.random.normal(k1, (dim, hidden), jnp.float32)
                   / math.sqrt(dim)).astype(jnp.bfloat16)
        self.Wt = (jax.random.normal(k2, (temb_dim, hidden), jnp.float32)
                   / math.sqrt(temb_dim)).astype(jnp.bfloat16)
        self.W2 = (jax.random.normal(k3, (hidden, dim), jnp.float32)
                   / math.sqrt(hidden)).astype(jnp.bfloat16)
        self.b1 = jnp.zeros((1, hidden), jnp.float32)
        self.b2 = jnp.zeros((1, dim), jnp.float32)

    # -------------------------------------------------------------------------
    def forward(self, x_start, t, ret_pred_x=False, noise=None, cond=None,
                block_batch=1024):
        """x_start: [B, D] f32, t: [B] int32, noise: [B, D] f32 or None."""
        del cond  # unconditional model: cond is unused in the training forward
        if noise is None:
            # TODO(synk): original uses torch.randn_like; pass noise explicitly
            # for reproducibility (fixed key used here).
            noise = jax.random.normal(jax.random.PRNGKey(1), x_start.shape,
                                      x_start.dtype)

        B, D = x_start.shape
        H, TE = self.hidden, self.temb_dim

        TB = _choose_tile(B, block_batch, D, H, TE, ret_pred_x)
        Bp = pl.cdiv(B, TB) * TB
        ntiles = Bp // TB
        pad = Bp - B
        if pad:
            # Fallback only (no multiple-of-16 tile divides B exactly).
            x0_p = jnp.pad(x_start, ((0, pad), (0, 0)))
            noise_p = jnp.pad(noise, ((0, pad), (0, 0)))
            t_p = jnp.pad(t, (0, pad))
        else:
            x0_p, noise_p, t_p = x_start, noise, t

        # extract(buffer, t, shape) gathers, packed into one per-example slab
        sa = self.sqrt_alphas_cumprod[t_p]
        soma = self.sqrt_one_minus_alphas_cumprod[t_p]
        p2 = self.p2_loss_weight[t_p]
        scal = jnp.stack([sa, soma, p2, jnp.zeros_like(sa)], axis=1)   # [Bp, 4] f32

        # sinusoidal embedding computed in f32, streamed as bf16 (matmul operand)
        temb = sinusoidal_time_embedding(t_p, TE).astype(jnp.bfloat16)  # [Bp, TE]

        row2 = lambda i: (i, 0)          # batch-tiled blocks
        row3 = lambda i: (i, 0, 0)
        resident = lambda i: (0, 0)      # weights stay in VMEM across steps
        # TODO(synk): on v7x with large D/H, mark the resident weight specs
        # single-buffered (pipeline_mode) to free VMEM for larger tiles.

        in_specs = [
            pl.BlockSpec((TB, D), row2),        # x_start
            pl.BlockSpec((TB, D), row2),        # noise
            pl.BlockSpec((TB, 4), row2),        # packed sa/soma/p2
            pl.BlockSpec((TB, TE), row2),       # temb (bf16)
            pl.BlockSpec((D, H), resident),     # W1 (bf16)
            pl.BlockSpec((TE, H), resident),    # Wt (bf16)
            pl.BlockSpec((1, H), resident),     # b1
            pl.BlockSpec((H, D), resident),     # W2 (bf16)
            pl.BlockSpec((1, D), resident),     # b2
        ]
        unred_shape = jax.ShapeDtypeStruct((ntiles, 1, TB), jnp.float32)
        unred_spec = pl.BlockSpec((1, 1, TB), row3)
        cparams = pltpu.CompilerParams(
            dimension_semantics=("parallel",),
            vmem_limit_bytes=_VMEM_LIMIT_BYTES)
        args = (x0_p, noise_p, scal, temb,
                self.W1, self.Wt, self.b1, self.W2, self.b2)

        if ret_pred_x:
            x, model_out, unred = pl.pallas_call(
                _fwd_kernel_full,
                out_shape=(jax.ShapeDtypeStruct((Bp, D), jnp.float32),
                           jax.ShapeDtypeStruct((Bp, D), jnp.float32),
                           unred_shape),
                grid=(ntiles,),
                in_specs=in_specs,
                out_specs=(pl.BlockSpec((TB, D), row2),
                           pl.BlockSpec((TB, D), row2),
                           unred_spec),
                compiler_params=cparams,
            )(*args)
            unred = unred.reshape(Bp)[:B]
            loss = jnp.mean(unred)        # == global mean (all rows have D elems)
            target = x_start              # objective == 'pred_x0'
            return loss, x[:B], target, model_out[:B], unred
        else:
            unred = pl.pallas_call(
                _fwd_kernel_loss_only,
                out_shape=unred_shape,
                grid=(ntiles,),
                in_specs=in_specs,
                out_specs=unred_spec,
                compiler_params=cparams,
            )(*args)
            unred = unred.reshape(Bp)[:B]
            return jnp.mean(unred), unred

    # pure-JAX reference of the same computation (for a correctness check)
    def forward_ref(self, x_start, t, noise):
        sa = self.sqrt_alphas_cumprod[t][:, None]
        soma = self.sqrt_one_minus_alphas_cumprod[t][:, None]
        p2 = self.p2_loss_weight[t][:, None]
        x = sa * x_start + soma * noise
        temb = sinusoidal_time_embedding(t, self.temb_dim).astype(jnp.bfloat16)
        tadd = jnp.dot(temb, self.Wt, preferred_element_type=jnp.float32) + self.b1
        h = jnp.maximum(
            jnp.dot(x.astype(jnp.bfloat16), self.W1,
                    preferred_element_type=jnp.float32) + tadd, 0.0)
        out = jnp.dot(h.astype(jnp.bfloat16), self.W2,
                      preferred_element_type=jnp.float32) + self.b2
        loss_elt = (out - x_start) ** 2 * p2
        return loss_elt.mean(), x, out, loss_elt.mean(axis=1)


# -----------------------------------------------------------------------------
if __name__ == "__main__":
    B, D, H, TE = 64, 128, 128, 32
    TIMESTEPS = 1000

    key = jax.random.PRNGKey(0)
    k_param, k_x, k_n, k_t = jax.random.split(key, 4)

    model = DiffusionModelVectorUncondPallas(D, H, TE,
                                             timesteps=TIMESTEPS, key=k_param)

    x_start = jax.random.normal(k_x, (B, D), jnp.float32)
    noise = jax.random.normal(k_n, (B, D), jnp.float32)
    t = jax.random.randint(k_t, (B,), 0, TIMESTEPS, dtype=jnp.int32)

    # full mode: grid of 2 tiles of 32 rows (no padding, >=2 steps for v7x)
    loss, x, target, model_out, unred = model.forward(
        x_start, t, ret_pred_x=True, noise=noise)
    jax.block_until_ready((loss, x, target, model_out, unred))

    loss_r, x_r, out_r, unred_r = model.forward_ref(x_start, t, noise)
    assert jnp.allclose(x, x_r, atol=1e-5, rtol=1e-5)
    assert jnp.allclose(model_out, out_r, atol=1e-2, rtol=1e-2)
    assert jnp.allclose(unred, unred_r, atol=1e-2, rtol=1e-2)
    assert jnp.allclose(loss, loss_r, atol=1e-2, rtol=1e-2)
    assert jnp.allclose(target, x_start)

    # loss-only mode (ret_pred_x=False): write-light kernel variant
    loss2, unred2 = model.forward(x_start, t, ret_pred_x=False, noise=noise)
    jax.block_until_ready((loss2, unred2))
    assert jnp.allclose(unred2, unred_r, atol=1e-2, rtol=1e-2)
    assert jnp.allclose(loss2, loss_r, atol=1e-2, rtol=1e-2)

    # padding-fallback path (batch not a multiple of 16)
    B2 = 50
    loss3, unred3 = model.forward(x_start[:B2], t[:B2], ret_pred_x=False,
                                  noise=noise[:B2])
    jax.block_until_ready((loss3, unred3))
    assert jnp.allclose(unred3, unred_r[:B2], atol=1e-2, rtol=1e-2)

    print("KERNEL_OK")
</pallas_src>

<mosaic_0001>
module attributes {stable_mosaic.version = 11 : i64} {
  func.func @_fwd_kernel_full(%arg0: i32, %arg1: memref<32x128xf32, #tpu.memory_space<vmem>>, %arg2: memref<32x128xf32, #tpu.memory_space<vmem>>, %arg3: memref<32x4xf32, #tpu.memory_space<vmem>>, %arg4: memref<32x32xbf16, #tpu.memory_space<vmem>>, %arg5: memref<128x128xbf16, #tpu.memory_space<vmem>>, %arg6: memref<32x128xbf16, #tpu.memory_space<vmem>>, %arg7: memref<1x128xf32, #tpu.memory_space<vmem>>, %arg8: memref<128x128xbf16, #tpu.memory_space<vmem>>, %arg9: memref<1x128xf32, #tpu.memory_space<vmem>>, %arg10: memref<32x128xf32, #tpu.memory_space<vmem>>, %arg11: memref<32x128xf32, #tpu.memory_space<vmem>>, %arg12: memref<1x1x32xf32, #tpu.memory_space<vmem>>) attributes {dimension_semantics = [#tpu.dimension_semantics<parallel>], iteration_bounds = array<i64: 2>, scalar_prefetch = 0 : i64, scratch_operands = 0 : i64, tpu.core_type = #tpu.core_type<tc>, window_params = [{transform_indices = @transform_0, window_bounds = array<i64: 32, 128>}, {transform_indices = @transform_1, window_bounds = array<i64: 32, 128>}, {transform_indices = @transform_2, window_bounds = array<i64: 32, 4>}, {transform_indices = @transform_3, window_bounds = array<i64: 32, 32>}, {pipeline_mode = #tpu.pipeline_mode<synchronous>, transform_indices = @transform_4, window_bounds = array<i64: 128, 128>}, {pipeline_mode = #tpu.pipeline_mode<synchronous>, transform_indices = @transform_5, window_bounds = array<i64: 32, 128>}, {pipeline_mode = #tpu.pipeline_mode<synchronous>, transform_indices = @transform_6, window_bounds = array<i64: 1, 128>}, {pipeline_mode = #tpu.pipeline_mode<synchronous>, transform_indices = @transform_7, window_bounds = array<i64: 128, 128>}, {pipeline_mode = #tpu.pipeline_mode<synchronous>, transform_indices = @transform_8, window_bounds = array<i64: 1, 128>}, {transform_indices = @transform_9, window_bounds = array<i64: 32, 128>}, {transform_indices = @transform_10, window_bounds = array<i64: 32, 128>}, {transform_indices = @transform_11, window_bounds = array<i64: 1, 1, 32>}]} {
    %c0 = arith.constant 0 : index
    %c0_0 = arith.constant 0 : index
    %0 = vector.load %arg1[%c0, %c0_0] : memref<32x128xf32, #tpu.memory_space<vmem>>, vector<32x128xf32>
    %c0_1 = arith.constant 0 : index
    %c0_2 = arith.constant 0 : index
    %1 = vector.load %arg3[%c0_1, %c0_2] : memref<32x4xf32, #tpu.memory_space<vmem>>, vector<32x4xf32>
    %2 = vector.extract_strided_slice %1 {offsets = [0, 0], sizes = [32, 1], strides = [1, 1]} : vector<32x4xf32> to vector<32x1xf32>
    %3 = vector.broadcast %2 : vector<32x1xf32> to vector<32x128xf32>
    %4 = arith.mulf %3, %0 : vector<32x128xf32>
    %5 = vector.extract_strided_slice %1 {offsets = [0, 1], sizes = [32, 1], strides = [1, 1]} : vector<32x4xf32> to vector<32x1xf32>
    %c0_3 = arith.constant 0 : index
    %c0_4 = arith.constant 0 : index
    %6 = vector.load %arg2[%c0_3, %c0_4] : memref<32x128xf32, #tpu.memory_space<vmem>>, vector<32x128xf32>
    %7 = vector.broadcast %5 : vector<32x1xf32> to vector<32x128xf32>
    %8 = arith.mulf %7, %6 : vector<32x128xf32>
    %9 = arith.addf %4, %8 : vector<32x128xf32>
    %c0_5 = arith.constant 0 : index
    %c0_6 = arith.constant 0 : index
    %10 = vector.load %arg10[%c0_5, %c0_6] : memref<32x128xf32, #tpu.memory_space<vmem>>, vector<32x128xf32>
    tpu.vector_store %arg10[%c0_5, %c0_6], %9 {strides = array<i32>} : memref<32x128xf32, #tpu.memory_space<vmem>>, vector<32x128xf32>,
    %11 = vector.extract_strided_slice %1 {offsets = [0, 2], sizes = [32, 1], strides = [1, 1]} : vector<32x4xf32> to vector<32x1xf32>
    %c0_7 = arith.constant 0 : index
    %c0_8 = arith.constant 0 : index
    %12 = vector.load %arg4[%c0_7, %c0_8] : memref<32x32xbf16, #tpu.memory_space<vmem>>, vector<32x32xbf16>
    %c0_9 = arith.constant 0 : index
    %c0_10 = arith.constant 0 : index
    %13 = vector.load %arg6[%c0_9, %c0_10] : memref<32x128xbf16, #tpu.memory_space<vmem>>, vector<32x128xbf16>
    %cst = arith.constant dense<0.000000e+00> : vector<32x128xf32>
    %14 = tpu.matmul %12, %13, %cst {dimension_numbers = #tpu.dot_dimension_numbers<[1], [0], [0], [1], [0, 0, 1, 1], [], []>} : vector<32x32xbf16>, vector<32x128xbf16>, vector<32x128xf32> -> vector<32x128xf32>
    %c0_11 = arith.constant 0 : index
    %c0_12 = arith.constant 0 : index
    %15 = vector.load %arg7[%c0_11, %c0_12] : memref<1x128xf32, #tpu.memory_space<vmem>>, vector<1x128xf32>
    %16 = vector.broadcast %15 : vector<1x128xf32> to vector<32x128xf32>
    %17 = arith.addf %14, %16 : vector<32x128xf32>
    %18 = arith.truncf %9 : vector<32x128xf32> to vector<32x128xbf16>
    %c0_13 = arith.constant 0 : index
    %c0_14 = arith.constant 0 : index
    %19 = vector.load %arg5[%c0_13, %c0_14] : memref<128x128xbf16, #tpu.memory_space<vmem>>, vector<128x128xbf16>
    %cst_15 = arith.constant dense<0.000000e+00> : vector<32x128xf32>
    %20 = tpu.matmul %18, %19, %cst_15 {dimension_numbers = #tpu.dot_dimension_numbers<[1], [0], [0], [1], [0, 0, 1, 1], [], []>} : vector<32x128xbf16>, vector<128x128xbf16>, vector<32x128xf32> -> vector<32x128xf32>
    %21 = arith.addf %20, %17 : vector<32x128xf32>
    %cst_16 = arith.constant 0.000000e+00 : f32
    %22 = vector.broadcast %cst_16 : f32 to vector<32x128xf32>
    %23 = arith.maximumf %21, %22 : vector<32x128xf32>
    %24 = arith.truncf %23 : vector<32x128xf32> to vector<32x128xbf16>
    %c0_17 = arith.constant 0 : index
    %c0_18 = arith.constant 0 : index
    %25 = vector.load %arg8[%c0_17, %c0_18] : memref<128x128xbf16, #tpu.memory_space<vmem>>, vector<128x128xbf16>
    %cst_19 = arith.constant dense<0.000000e+00> : vector<32x128xf32>
    %26 = tpu.matmul %24, %25, %cst_19 {dimension_numbers = #tpu.dot_dimension_numbers<[1], [0], [0], [1], [0, 0, 1, 1], [], []>} : vector<32x128xbf16>, vector<128x128xbf16>, vector<32x128xf32> -> vector<32x128xf32>
    %c0_20 = arith.constant 0 : index
    %c0_21 = arith.constant 0 : index
    %27 = vector.load %arg9[%c0_20, %c0_21] : memref<1x128xf32, #tpu.memory_space<vmem>>, vector<1x128xf32>
    %28 = vector.broadcast %27 : vector<1x128xf32> to vector<32x128xf32>
    %29 = arith.addf %26, %28 : vector<32x128xf32>
    %30 = arith.subf %29, %0 : vector<32x128xf32>
    %31 = arith.mulf %30, %30 : vector<32x128xf32>
    %32 = vector.broadcast %11 : vector<32x1xf32> to vector<32x128xf32>
    %33 = arith.mulf %31, %32 : vector<32x128xf32>
    %cst_22 = arith.constant 1.000000e+00 : f32
    %34 = vector.broadcast %cst_22 : f32 to vector<1x128xf32>
    "tpu.trace_start"() <{level = 10 : i32, message = "rd,td->rt"}> : () -> ()
    %cst_23 = arith.constant dense<0.000000e+00> : vector<1x32xf32>
    %35 = tpu.matmul %34, %33, %cst_23 {dimension_numbers = #tpu.dot_dimension_numbers<[1], [1], [0], [0], [0, 0, 1, 0], [], []>} : vector<1x128xf32>, vector<32x128xf32>, vector<1x32xf32> -> vector<1x32xf32>
    "tpu.trace_stop"() : () -> ()
    %cst_24 = arith.constant 7.812500e-03 : f32
    %36 = vector.broadcast %cst_24 : f32 to vector<1x32xf32>
    %37 = arith.mulf %35, %36 : vector<1x32xf32>
    %c0_25 = arith.constant 0 : index
    %c0_26 = arith.constant 0 : index
    %38 = vector.load %arg11[%c0_25, %c0_26] : memref<32x128xf32, #tpu.memory_space<vmem>>, vector<32x128xf32>
    tpu.vector_store %arg11[%c0_25, %c0_26], %29 {strides = array<i32>} : memref<32x128xf32, #tpu.memory_space<vmem>>, vector<32x128xf32>,
    %39 = vector.shape_cast %37 : vector<1x32xf32> to vector<1x1x32xf32>
    %c0_27 = arith.constant 0 : index
    %c0_28 = arith.constant 0 : index
    %c0_29 = arith.constant 0 : index
    %40 = vector.load %arg12[%c0_27, %c0_28, %c0_29] : memref<1x1x32xf32, #tpu.memory_space<vmem>>, vector<1x1x32xf32>
    tpu.vector_store %arg12[%c0_27, %c0_28, %c0_29], %39 {strides = array<i32>} : memref<1x1x32xf32, #tpu.memory_space<vmem>>, vector<1x1x32xf32>,
    return
  }
  func.func @transform_0(%arg0: i32) -> (i32, i32) {
    %c0_i32 = arith.constant 0 : i32
    %c0_i32_0 = arith.constant 0 : i32
    return %arg0, %c0_i32 : i32, i32
  }
  func.func @transform_1(%arg0: i32) -> (i32, i32) {
    %c0_i32 = arith.constant 0 : i32
    %c0_i32_0 = arith.constant 0 : i32
    return %arg0, %c0_i32 : i32, i32
  }
  func.func @transform_2(%arg0: i32) -> (i32, i32) {
    %c0_i32 = arith.constant 0 : i32
    %c0_i32_0 = arith.constant 0 : i32
    return %arg0, %c0_i32 : i32, i32
  }
  func.func @transform_3(%arg0: i32) -> (i32, i32) {
    %c0_i32 = arith.constant 0 : i32
    %c0_i32_0 = arith.constant 0 : i32
    return %arg0, %c0_i32 : i32, i32
  }
  func.func @transform_4(%arg0: i32) -> (i32, i32) {
    %c0_i32 = arith.constant 0 : i32
    %c0_i32_0 = arith.constant 0 : i32
    %c0_i32_1 = arith.constant 0 : i32
    return %c0_i32, %c0_i32_0 : i32, i32
  }
  func.func @transform_5(%arg0: i32) -> (i32, i32) {
    %c0_i32 = arith.constant 0 : i32
    %c0_i32_0 = arith.constant 0 : i32
    %c0_i32_1 = arith.constant 0 : i32
    return %c0_i32, %c0_i32_0 : i32, i32
  }
  func.func @transform_6(%arg0: i32) -> (i32, i32) {
    %c0_i32 = arith.constant 0 : i32
    %c0_i32_0 = arith.constant 0 : i32
    %c0_i32_1 = arith.constant 0 : i32
    return %c0_i32, %c0_i32_0 : i32, i32
  }
  func.func @transform_7(%arg0: i32) -> (i32, i32) {
    %c0_i32 = arith.constant 0 : i32
    %c0_i32_0 = arith.constant 0 : i32
    %c0_i32_1 = arith.constant 0 : i32
    return %c0_i32, %c0_i32_0 : i32, i32
  }
  func.func @transform_8(%arg0: i32) -> (i32, i32) {
    %c0_i32 = arith.constant 0 : i32
    %c0_i32_0 = arith.constant 0 : i32
    %c0_i32_1 = arith.constant 0 : i32
    return %c0_i32, %c0_i32_0 : i32, i32
  }
  func.func @transform_9(%arg0: i32) -> (i32, i32) {
    %c0_i32 = arith.constant 0 : i32
    %c0_i32_0 = arith.constant 0 : i32
    return %arg0, %c0_i32 : i32, i32
  }
  func.func @transform_10(%arg0: i32) -> (i32, i32) {
    %c0_i32 = arith.constant 0 : i32
    %c0_i32_0 = arith.constant 0 : i32
    return %arg0, %c0_i32 : i32, i32
  }
  func.func @transform_11(%arg0: i32) -> (i32, i32, i32) {
    %c0_i32 = arith.constant 0 : i32
    %c0_i32_0 = arith.constant 0 : i32
    %c0_i32_1 = arith.constant 0 : i32
    return %arg0, %c0_i32, %c0_i32_0 : i32, i32, i32
  }
}

</mosaic_0001>

<llo_original>
// kernel: tpu_custom_call.1
$region0: #{tpu_custom_call.1}
  #allocation0 [shape = 'u32[]', space=smem, size = 0x4, offset = 0x4, fixed_abs, tag = 'smem constant byte address 0x4 - core index']
  #allocation1 [shape = 'u32[144,128]{1,0:T(1,128)}', space=vmem, size = 0x12000, scoped, tag = 'internal scratch']
  %s0 = inlined_call_operand.vmem [shape: f32[64,128], index: 0, kind: input, shape index: {}]
  %s1 = inlined_call_operand.hbm [shape: f32[64,128], index: 1, kind: input, shape index: {}]
  %s2 = inlined_call_operand.vmem [shape: f32[64,4], index: 2, kind: input, shape index: {}]
  %s3 = inlined_call_operand.vmem [shape: bf16[64,32], index: 3, kind: input, shape index: {}]
  %s4 = inlined_call_operand.vmem [shape: bf16[128,128], index: 4, kind: input, shape index: {}]
  %s5 = inlined_call_operand.hbm [shape: bf16[32,128], index: 5, kind: input, shape index: {}]
  %s6 = inlined_call_operand.vmem [shape: f32[1,128], index: 6, kind: input, shape index: {}]
  %s7 = inlined_call_operand.hbm [shape: bf16[128,128], index: 7, kind: input, shape index: {}]
  %s8 = inlined_call_operand.vmem [shape: f32[1,128], index: 8, kind: input, shape index: {}]
  %s9 = inlined_call_operand.hbm [shape: f32[64,128], index: 9, kind: output, shape index: {0}]
  %s10 = inlined_call_operand.hbm [shape: f32[64,128], index: 10, kind: output, shape index: {1}]
  %s11 = inlined_call_operand.hbm [shape: f32[2,1,32], index: 11, kind: output, shape index: {2}]
  %12 = xla_tuple %s9, %s10, %s11
  %s13 = sld [smem:[#allocation0]]
  $region97: #{tpu_custom_call.1} parent=0
    _
  %s15 = ssub.s32 1, %s13
  %s16 = scalar_select 0, %s15, %s13
  $region1: #{tpu_custom_call.1} parent=0
    #allocation2 [shape = 'u8[32768]{0}', space=vmem, size = 0x8000, scoped, tag = 'input window, operand 1']
    #allocation3 [shape = 's32[2]{0}', space=sflag, size = 0x8, scoped, tag = 'scoped memory for tpu_custom_call.1']
    #allocation4 [shape = 's32[2]{0}', space=sflag, size = 0x8, scoped, tag = 'scoped memory for tpu_custom_call.1']
    #allocation5 [shape = 'u8[8192]{0}', space=vmem, size = 0x2000, scoped, tag = 'input window, operand 5, single buffered']
    #allocation6 [shape = 's32[1]{0}', space=sflag, size = 0x4, scoped, tag = 'scoped memory for tpu_custom_call.1']
    #allocation7 [shape = 'u8[32768]{0}', space=vmem, size = 0x8000, scoped, tag = 'input window, operand 7, single buffered']
    #allocation8 [shape = 'u8[32768]{0}', space=vmem, size = 0x8000, scoped, tag = 'output window, operand 0']
    #allocation9 [shape = 'u8[32768]{0}', space=vmem, size = 0x8000, scoped, tag = 'output window, operand 1']
    #allocation10 [shape = 's32[2]{0}', space=sflag, size = 0x8, scoped, tag = 'scoped memory for tpu_custom_call.1']
    #allocation11 [shape = 'u8[1024]{0}', space=vmem, size = 0x400, scoped, tag = 'output window, operand 2']
    %17 = vsyncpa [#allocation3], 0
    %s18 = scalar_lea.sflag [#allocation3], 1
    %19 = vsyncpa %s18, 0
    %20 = vsyncpa [#allocation6], 0
    %21 = vsyncpa [#allocation4], 0
    %s22 = scalar_lea.sflag [#allocation4], 1
    %23 = vsyncpa %s22, 0
    %24 = vsyncpa [#allocation10], 0
    %s25 = scalar_lea.sflag [#allocation10], 1
    %26 = vsyncpa %s25, 0
    loop: start=0, step=1, limit=4
    $region2: #{tpu_custom_call.1} parent=1 // loop_pre_header
      _
    $region3: #{tpu_custom_call.1} parent=1 // loop_header
      %s28 = sphi 0, %s32
      %p29 = scmp.ge.s32.totalorder %s28, 4
      %s38 = sphi 0, %s40
      %s41 = sphi 0, %s38
      %s42 = sphi 0, %s41
      %s58 = sphi 0, %s42
      %s64 = sphi 0, %s66
      %s67 = sphi 0, %s64
      %s68 = sphi 0, %s67
      %s84 = sphi 0, %s68
      %s90 = sphi 0, %s92
      %s93 = sphi 0, %s90
      %s94 = sphi 0, %s93
      %s110 = sphi 0, %s94
      %s116 = sphi 0, %s118
      %s119 = sphi 0, %s116
      %s120 = sphi 0, %s119
      %s136 = sphi 0, %s120
      %s140 = sphi 0, %s140
      %s142 = sphi 0, %s140
      %s143 = sphi 0, %s142
      %s157 = sphi 0, %s143
      %s161 = sphi 0, %s161
      %s163 = sphi 0, %s161
      %s164 = sphi 0, %s163
      %s178 = sphi 0, %s164
      %s182 = sphi 0, %s182
      %s184 = sphi 0, %s182
      %s185 = sphi 0, %s184
      %s199 = sphi 0, %s185
      %s203 = sphi 0, %s203
      %s205 = sphi 0, %s203
      %s206 = sphi 0, %s205
      %s220 = sphi 0, %s206
      %s224 = sphi 0, %s224
      %s226 = sphi 0, %s224
      %s227 = sphi 0, %s226
      %s241 = sphi 0, %s227
      %s247 = sphi 0, %s249
      %s250 = sphi 0, %s247
      %s251 = sphi 0, %s250
      %s267 = sphi 0, %s251
      %s273 = sphi 0, %s275
      %s276 = sphi 0, %s273
      %s277 = sphi 0, %s276
      %s293 = sphi 0, %s277
      %s299 = sphi 0, %s301
      %s302 = sphi 0, %s299
      %s303 = sphi 0, %s302
      %s319 = sphi 0, %s303
    $region4: #{tpu_custom_call.1} parent=1 // loop_header_branch
      %31 = sbr.rel (%p29) target = $region8
    $region5: #{tpu_custom_call.1} parent=1 // loop_body
      %s33 = ssub.s32 %s28, 1
      %s34 = ssub.s32 %s28, 2
      %s35 = sadd.s32 %s28, 1
      %s36 = ssub.s32 %s28, %s35
      %p37 = scmp.eq.s32.totalorder %s36, 0
      %s39 = sadd.s32 %s38, 1
      %s40 = scalar_select %p37, %s38, %s39
      %p43 = pneg %p37
      %p44 = scmp.eq.s32.totalorder %s28, 1
      %p45 = por %p43, %p44
      %p46 = scmp.ne.s32.totalorder %s38, %s41
      %p47 = scmp.eq.s32.totalorder %s28, 0
      %p48 = por %p46, %p47
      %p49 = scmp.ne.s32.totalorder %s38, %s41
      %p50 = scmp.eq.s32.totalorder %s33, 1
      %p51 = por %p49, %p50
      %p52 = scmp.ne.s32.totalorder %s41, %s42
      %p53 = scmp.eq.s32.totalorder %s33, 0
      %p54 = por %p52, %p53
      %p55 = scmp.ne.s32.totalorder %s41, %s42
      %p56 = scmp.eq.s32.totalorder %s34, 1
      %p57 = por %p55, %p56
      %p59 = scmp.ne.s32.totalorder %s42, %s58
      %p60 = scmp.eq.s32.totalorder %s34, 0
      %p61 = por %p59, %p60
      %s62 = ssub.s32 %s28, %s35
      %p63 = scmp.eq.s32.totalorder %s62, 0
      %s65 = sadd.s32 %s64, 1
      %s66 = scalar_select %p63, %s64, %s65
      %p69 = pneg %p63
      %p70 = scmp.eq.s32.totalorder %s28, 1
      %p71 = por %p69, %p70
      %p72 = scmp.ne.s32.totalorder %s64, %s67
      %p73 = scmp.eq.s32.totalorder %s28, 0
      %p74 = por %p72, %p73
      %p75 = scmp.ne.s32.totalorder %s64, %s67
      %p76 = scmp.eq.s32.totalorder %s33, 1
      %p77 = por %p75, %p76
      %p78 = scmp.ne.s32.totalorder %s67, %s68
      %p79 = scmp.eq.s32.totalorder %s33, 0
      %p80 = por %p78, %p79
      %p81 = scmp.ne.s32.totalorder %s67, %s68
      %p82 = scmp.eq.s32.totalorder %s34, 1
      %p83 = por %p81, %p82
      %p85 = scmp.ne.s32.totalorder %s68, %s84
      %p86 = scmp.eq.s32.totalorder %s34, 0
      %p87 = por %p85, %p86
      %s88 = ssub.s32 %s28, %s35
      %p89 = scmp.eq.s32.totalorder %s88, 0
      %s91 = sadd.s32 %s90, 1
      %s92 = scalar_select %p89, %s90, %s91
      %p95 = pneg %p89
      %p96 = scmp.eq.s32.totalorder %s28, 1
      %p97 = por %p95, %p96
      %p98 = scmp.ne.s32.totalorder %s90, %s93
      %p99 = scmp.eq.s32.totalorder %s28, 0
      %p100 = por %p98, %p99
      %p101 = scmp.ne.s32.totalorder %s90, %s93
      %p102 = scmp.eq.s32.totalorder %s33, 1
      %p103 = por %p101, %p102
      %p104 = scmp.ne.s32.totalorder %s93, %s94
      %p105 = scmp.eq.s32.totalorder %s33, 0
      %p106 = por %p104, %p105
      %p107 = scmp.ne.s32.totalorder %s93, %s94
      %p108 = scmp.eq.s32.totalorder %s34, 1
      %p109 = por %p107, %p108
      %p111 = scmp.ne.s32.totalorder %s94, %s110
      %p112 = scmp.eq.s32.totalorder %s34, 0
      %p113 = por %p111, %p112
      %s114 = ssub.s32 %s28, %s35
      %p115 = scmp.eq.s32.totalorder %s114, 0
      %s117 = sadd.s32 %s116, 1
      %s118 = scalar_select %p115, %s116, %s117
      %p121 = pneg %p115
      %p122 = scmp.eq.s32.totalorder %s28, 1
      %p123 = por %p121, %p122
      %p124 = scmp.ne.s32.totalorder %s116, %s119
      %p125 = scmp.eq.s32.totalorder %s28, 0
      %p126 = por %p124, %p125
      %p127 = scmp.ne.s32.totalorder %s116, %s119
      %p128 = scmp.eq.s32.totalorder %s33, 1
      %p129 = por %p127, %p128
      %p130 = scmp.ne.s32.totalorder %s119, %s120
      %p131 = scmp.eq.s32.totalorder %s33, 0
      %p132 = por %p130, %p131
      %p133 = scmp.ne.s32.totalorder %s119, %s120
      %p134 = scmp.eq.s32.totalorder %s34, 1
      %p135 = por %p133, %p134
      %p137 = scmp.ne.s32.totalorder %s120, %s136
      %p138 = scmp.eq.s32.totalorder %s34, 0
      %p139 = por %p137, %p138
      %s141 = sadd.s32 %s140, 1
      %p144 = scmp.eq.s32.totalorder %s28, 1
      %p145 = scmp.ne.s32.totalorder %s140, %s142
      %p146 = scmp.eq.s32.totalorder %s28, 0
      %p147 = por %p145, %p146
      %p148 = scmp.ne.s32.totalorder %s140, %s142
      %p149 = scmp.eq.s32.totalorder %s33, 1
      %p150 = por %p148, %p149
      %p151 = scmp.ne.s32.totalorder %s142, %s143
      %p152 = scmp.eq.s32.totalorder %s33, 0
      %p153 = por %p151, %p152
      %p154 = scmp.ne.s32.totalorder %s142, %s143
      %p155 = scmp.eq.s32.totalorder %s34, 1
      %p156 = por %p154, %p155
      %p158 = scmp.ne.s32.totalorder %s143, %s157
      %p159 = scmp.eq.s32.totalorder %s34, 0
      %p160 = por %p158, %p159
      %s162 = sadd.s32 %s161, 1
      %p165 = scmp.eq.s32.totalorder %s28, 1
      %p166 = scmp.ne.s32.totalorder %s161, %s163
      %p167 = scmp.eq.s32.totalorder %s28, 0
      %p168 = por %p166, %p167
      %p169 = scmp.ne.s32.totalorder %s161, %s163
      %p170 = scmp.eq.s32.totalorder %s33, 1
      %p171 = por %p169, %p170
      %p172 = scmp.ne.s32.totalorder %s163, %s164
      %p173 = scmp.eq.s32.totalorder %s33, 0
      %p174 = por %p172, %p173
      %p175 = scmp.ne.s32.totalorder %s163, %s164
      %p176 = scmp.eq.s32.totalorder %s34, 1
      %p177 = por %p175, %p176
      %p179 = scmp.ne.s32.totalorder %s164, %s178
      %p180 = scmp.eq.s32.totalorder %s34, 0
      %p181 = por %p179, %p180
      %s183 = sadd.s32 %s182, 1
      %p186 = scmp.eq.s32.totalorder %s28, 1
      %p187 = scmp.ne.s32.totalorder %s182, %s184
      %p188 = scmp.eq.s32.totalorder %s28, 0
      %p189 = por %p187, %p188
      %p190 = scmp.ne.s32.totalorder %s182, %s184
      %p191 = scmp.eq.s32.totalorder %s33, 1
      %p192 = por %p190, %p191
      %p193 = scmp.ne.s32.totalorder %s184, %s185
      %p194 = scmp.eq.s32.totalorder %s33, 0
      %p195 = por %p193, %p194
      %p196 = scmp.ne.s32.totalorder %s184, %s185
      %p197 = scmp.eq.s32.totalorder %s34, 1
      %p198 = por %p196, %p197
      %p200 = scmp.ne.s32.totalorder %s185, %s199
      %p201 = scmp.eq.s32.totalorder %s34, 0
      %p202 = por %p200, %p201
      %s204 = sadd.s32 %s203, 1
      %p207 = scmp.eq.s32.totalorder %s28, 1
      %p208 = scmp.ne.s32.totalorder %s203, %s205
      %p209 = scmp.eq.s32.totalorder %s28, 0
      %p210 = por %p208, %p209
      %p211 = scmp.ne.s32.totalorder %s203, %s205
      %p212 = scmp.eq.s32.totalorder %s33, 1
      %p213 = por %p211, %p212
      %p214 = scmp.ne.s32.totalorder %s205, %s206
      %p215 = scmp.eq.s32.totalorder %s33, 0
      %p216 = por %p214, %p215
      %p217 = scmp.ne.s32.totalorder %s205, %s206
      %p218 = scmp.eq.s32.totalorder %s34, 1
      %p219 = por %p217, %p218
      %p221 = scmp.ne.s32.totalorder %s206, %s220
      %p222 = scmp.eq.s32.totalorder %s34, 0
      %p223 = por %p221, %p222
      %s225 = sadd.s32 %s224, 1
      %p228 = scmp.eq.s32.totalorder %s28, 1
      %p229 = scmp.ne.s32.totalorder %s224, %s226
      %p230 = scmp.eq.s32.totalorder %s28, 0
      %p231 = por %p229, %p230
      %p232 = scmp.ne.s32.totalorder %s224, %s226
      %p233 = scmp.eq.s32.totalorder %s33, 1
      %p234 = por %p232, %p233
      %p235 = scmp.ne.s32.totalorder %s226, %s227
      %p236 = scmp.eq.s32.totalorder %s33, 0
      %p237 = por %p235, %p236
      %p238 = scmp.ne.s32.totalorder %s226, %s227
      %p239 = scmp.eq.s32.totalorder %s34, 1
      %p240 = por %p238, %p239
      %p242 = scmp.ne.s32.totalorder %s227, %s241
      %p243 = scmp.eq.s32.totalorder %s34, 0
      %p244 = por %p242, %p243
      %s245 = ssub.s32 %s28, %s35
      %p246 = scmp.eq.s32.totalorder %s245, 0
      %s248 = sadd.s32 %s247, 1
      %s249 = scalar_select %p246, %s247, %s248
      %p252 = pneg %p246
      %p253 = scmp.eq.s32.totalorder %s28, 1
      %p254 = por %p252, %p253
      %p255 = scmp.ne.s32.totalorder %s247, %s250
      %p256 = scmp.eq.s32.totalorder %s28, 0
      %p257 = por %p255, %p256
      %p258 = scmp.ne.s32.totalorder %s247, %s250
      %p259 = scmp.eq.s32.totalorder %s33, 1
      %p260 = por %p258, %p259
      %p261 = scmp.ne.s32.totalorder %s250, %s251
      %p262 = scmp.eq.s32.totalorder %s33, 0
      %p263 = por %p261, %p262
      %p264 = scmp.ne.s32.totalorder %s250, %s251
      %p265 = scmp.eq.s32.totalorder %s34, 1
      %p266 = por %p264, %p265
      %p268 = scmp.ne.s32.totalorder %s251, %s267
      %p269 = scmp.eq.s32.totalorder %s34, 0
      %p270 = por %p268, %p269
      %s271 = ssub.s32 %s28, %s35
      %p272 = scmp.eq.s32.totalorder %s271, 0
      %s274 = sadd.s32 %s273, 1
      %s275 = scalar_select %p272, %s273, %s274
      %p278 = pneg %p272
      %p279 = scmp.eq.s32.totalorder %s28, 1
      %p280 = por %p278, %p279
      %p281 = scmp.ne.s32.totalorder %s273, %s276
      %p282 = scmp.eq.s32.totalorder %s28, 0
      %p283 = por %p281, %p282
      %p284 = scmp.ne.s32.totalorder %s273, %s276
      %p285 = scmp.eq.s32.totalorder %s33, 1
      %p286 = por %p284, %p285
      %p287 = scmp.ne.s32.totalorder %s276, %s277
      %p288 = scmp.eq.s32.totalorder %s33, 0
      %p289 = por %p287, %p288
      %p290 = scmp.ne.s32.totalorder %s276, %s277
      %p291 = scmp.eq.s32.totalorder %s34, 1
      %p292 = por %p290, %p291
      %p294 = scmp.ne.s32.totalorder %s277, %s293
      %p295 = scmp.eq.s32.totalorder %s34, 0
      %p296 = por %p294, %p295
      %s297 = ssub.s32 %s28, %s35
      %p298 = scmp.eq.s32.totalorder %s297, 0
      %s300 = sadd.s32 %s299, 1
      %s301 = scalar_select %p298, %s299, %s300
      %p304 = pneg %p298
      %p305 = scmp.eq.s32.totalorder %s28, 1
      %p306 = por %p304, %p305
      %p307 = scmp.ne.s32.totalorder %s299, %s302
      %p308 = scmp.eq.s32.totalorder %s28, 0
      %p309 = por %p307, %p308
      %p310 = scmp.ne.s32.totalorder %s299, %s302
      %p311 = scmp.eq.s32.totalorder %s33, 1
      %p312 = por %p310, %p311
      %p313 = scmp.ne.s32.totalorder %s302, %s303
      %p314 = scmp.eq.s32.totalorder %s33, 0
      %p315 = por %p313, %p314
      %p316 = scmp.ne.s32.totalorder %s302, %s303
      %p317 = scmp.eq.s32.totalorder %s34, 1
      %p318 = por %p316, %p317
      %p320 = scmp.ne.s32.totalorder %s303, %s319
      %p321 = scmp.eq.s32.totalorder %s34, 0
      %p322 = por %p320, %p321
      %p323 = scmp.le.s32.totalorder 1, %s28
      %p324 = scmp.lt.s32.totalorder %s28, 3
      %p325 = pnand %p323, %p324
      %p326 = pneg %p325
      // Predicated region
      $region9: #{tpu_custom_call.1} parent=5 // pred_check
        _
      $region10: #{tpu_custom_call.1} parent=5 // pred_check_branch
        %328 = sbr.rel (%p325) target = $region12
      $region11: #{tpu_custom_call.1} parent=5 // pred_region
        %s329 = ssub.s32 %s28, 1
        // Predicated region
        $region13: #{tpu_custom_call.1} parent=11 // pred_check
          %p330 = pneg %p153
        $region14: #{tpu_custom_call.1} parent=11 // pred_check_branch
          %332 = sbr.rel (%p330) target = $region16
        $region15: #{tpu_custom_call.1} parent=11 // pred_region
          _
        $region16: #{tpu_custom_call.1} parent=11 // pred_fallthru
          _
        // Predicated region
        $region17: #{tpu_custom_call.1} parent=11 // pred_check
          %p333 = pneg %p174
        $region18: #{tpu_custom_call.1} parent=11 // pred_check_branch
          %335 = sbr.rel (%p333) target = $region20
        $region19: #{tpu_custom_call.1} parent=11 // pred_region
          %s337 = ssub.s32 256, 256
          %338 = vsyncadd [#allocation6], %s337
          %s339 = sshll.u32 [#allocation5], 4
          %s340 = int_to_ptr.vmem [resolvable:$true] %s339
          %345 = dma.hbm_to_vmem [thread:$0]  %s5, 256, %s340, [#allocation6], 64, 64, 4
        $region20: #{tpu_custom_call.1} parent=11 // pred_fallthru
          _
        // Predicated region
        $region21: #{tpu_custom_call.1} parent=11 // pred_check
          %p346 = pneg %p195
        $region22: #{tpu_custom_call.1} parent=11 // pred_check_branch
          %348 = sbr.rel (%p346) target = $region24
        $region23: #{tpu_custom_call.1} parent=11 // pred_region
          _
        $region24: #{tpu_custom_call.1} parent=11 // pred_fallthru
          _
        // Predicated region
        $region25: #{tpu_custom_call.1} parent=11 // pred_check
          %p349 = pneg %p216
        $region26: #{tpu_custom_call.1} parent=11 // pred_check_branch
          %351 = sbr.rel (%p349) target = $region28
        $region27: #{tpu_custom_call.1} parent=11 // pred_region
          %s353 = ssub.s32 1024, 1024
          %354 = vsyncadd [#allocation6], %s353
          %s355 = sshll.u32 [#allocation7], 4
          %s356 = int_to_ptr.vmem [resolvable:$true] %s355
          %361 = dma.hbm_to_vmem [thread:$0]  %s7, 1024, %s356, [#allocation6], 64, 64, 4
        $region28: #{tpu_custom_call.1} parent=11 // pred_fallthru
          _
        // Predicated region
        $region29: #{tpu_custom_call.1} parent=11 // pred_check
          %p362 = pneg %p237
        $region30: #{tpu_custom_call.1} parent=11 // pred_check_branch
          %364 = sbr.rel (%p362) target = $region32
        $region31: #{tpu_custom_call.1} parent=11 // pred_region
          _
        $region32: #{tpu_custom_call.1} parent=11 // pred_fallthru
          _
      $region12: #{tpu_custom_call.1} parent=5 // pred_fallthru
        _
      %p365 = scmp.lt.s32.totalorder %s28, 2
      // Predicated region
      $region33: #{tpu_custom_call.1} parent=5 // pred_check
        %p366 = pneg %p365
      $region34: #{tpu_custom_call.1} parent=5 // pred_check_branch
        %368 = sbr.rel (%p366) target = $region36
      $region35: #{tpu_custom_call.1} parent=5 // pred_region
        // Predicated region
        $region37: #{tpu_custom_call.1} parent=35 // pred_check
          %p369 = pneg %p48
        $region38: #{tpu_custom_call.1} parent=35 // pred_check_branch
          %371 = sbr.rel (%p369) target = $region40
        $region39: #{tpu_custom_call.1} parent=35 // pred_region
          %s372 = smul.u32 4, %s28
          %p373 = scmp.lt.s32.totalorder %s372, 7
          %s374 = scalar_select %p373, %s372, 7
          %s375 = smul.addr %s374, 8
          %s376 = scalar_lea.vmem %s0, %s375
          %s377 = smul.u32 4, %s28
        $region40: #{tpu_custom_call.1} parent=35 // pred_fallthru
          _
        // Predicated region
        $region41: #{tpu_custom_call.1} parent=35 // pred_check
          %p378 = pneg %p74
        $region42: #{tpu_custom_call.1} parent=35 // pred_check_branch
          %380 = sbr.rel (%p378) target = $region44
        $region43: #{tpu_custom_call.1} parent=35 // pred_region
          %s381 = sand.u32 %s64, 1
          %s382 = scalar_lea.sflag [#allocation3], %s381
          %s383 = sand.u32 %s64, 1
          %s384 = smul.addr %s383, 32
          %s385 = scalar_lea.vmem [#allocation2], %s384
          %s386 = smul.u32 4, %s28
          %s388 = ssub.s32 512, 512
          %389 = vsyncadd %s382, %s388
          %s390 = smul.addr %s386, 128
          %s391 = scalar_lea.hbm %s1, %s390
          %s392 = sshll.u32 %s385, 4
          %s393 = int_to_ptr.vmem [resolvable:$true] %s392
          %398 = dma.hbm_to_vmem [thread:$0]  %s391, 512, %s393, %s382, 128, 128, 8
        $region44: #{tpu_custom_call.1} parent=35 // pred_fallthru
          _
        // Predicated region
        $region45: #{tpu_custom_call.1} parent=35 // pred_check
          %p399 = pneg %p100
        $region46: #{tpu_custom_call.1} parent=35 // pred_check_branch
          %401 = sbr.rel (%p399) target = $region48
        $region47: #{tpu_custom_call.1} parent=35 // pred_region
          %s402 = smul.u32 4, %s28
          %p403 = scmp.lt.s32.totalorder %s402, 7
          %s404 = scalar_select %p403, %s402, 7
          %s405 = smul.addr %s404, 8
          %s406 = scalar_lea.vmem %s2, %s405
          %s407 = smul.u32 4, %s28
        $region48: #{tpu_custom_call.1} parent=35 // pred_fallthru
          _
        // Predicated region
        $region49: #{tpu_custom_call.1} parent=35 // pred_check
          %p408 = pneg %p126
        $region50: #{tpu_custom_call.1} parent=35 // pred_check_branch
          %410 = sbr.rel (%p408) target = $region52
        $region51: #{tpu_custom_call.1} parent=35 // pred_region
          %s411 = smul.u32 4, %s28
          %p412 = scmp.lt.s32.totalorder %s411, 7
          %s413 = scalar_select %p412, %s411, 7
          %s414 = smul.addr %s413, 4
          %s415 = scalar_lea.vmem %s3, %s414
          %s416 = smul.u32 4, %s28
        $region52: #{tpu_custom_call.1} parent=35 // pred_fallthru
          _
      $region36: #{tpu_custom_call.1} parent=5 // pred_fallthru
        _
      %p417 = scmp.le.s32.totalorder 1, %s28
      %p418 = scmp.lt.s32.totalorder %s28, 3
      %p419 = pnand %p417, %p418
      %p420 = pneg %p419
      // Predicated region
      $region53: #{tpu_custom_call.1} parent=5 // pred_check
        _
      $region54: #{tpu_custom_call.1} parent=5 // pred_check_branch
        %422 = sbr.rel (%p419) target = $region56
      $region55: #{tpu_custom_call.1} parent=5 // pred_region
        %s423 = ssub.s32 %s28, 1
        %s424 = sand.u32 %s67, 1
        %s425 = scalar_lea.sflag [#allocation3], %s424
        %s426 = sand.u32 %s67, 1
        %s427 = smul.addr %s426, 32
        %s428 = scalar_lea.vmem [#allocation2], %s427
        // Predicated region
        $region57: #{tpu_custom_call.1} parent=55 // pred_check
          %p429 = pneg %p80
        $region58: #{tpu_custom_call.1} parent=55 // pred_check_branch
          %431 = sbr.rel (%p429) target = $region60
        $region59: #{tpu_custom_call.1} parent=55 // pred_region
          %432 = dma.done %s425, 512
        $region60: #{tpu_custom_call.1} parent=55 // pred_fallthru
          _
        // Predicated region
        $region61: #{tpu_custom_call.1} parent=55 // pred_check
          %p433 = pneg %p174
        $region62: #{tpu_custom_call.1} parent=55 // pred_check_branch
          %435 = sbr.rel (%p433) target = $region64
        $region63: #{tpu_custom_call.1} parent=55 // pred_region
          %436 = dma.done [#allocation6], 256
        $region64: #{tpu_custom_call.1} parent=55 // pred_fallthru
          _
        // Predicated region
        $region65: #{tpu_custom_call.1} parent=55 // pred_check
          %p437 = pneg %p216
        $region66: #{tpu_custom_call.1} parent=55 // pred_check_branch
          %439 = sbr.rel (%p437) target = $region68
        $region67: #{tpu_custom_call.1} parent=55 // pred_region
          %440 = dma.done [#allocation6], 1024
        $region68: #{tpu_custom_call.1} parent=55 // pred_fallthru
          _
        %s441 = smul.u32 4, %s33
        %p442 = scmp.lt.s32.totalorder %s441, 7
        %s443 = scalar_select %p442, %s441, 7
        %s444 = smul.addr %s443, 8
        %s445 = scalar_lea.vmem %s0, %s444
        %p446 = pneg %p54
        %p447 = pneg %p51
        %s448 = sand.u32 %s67, 1
        %s449 = scalar_lea.sflag [#allocation3], %s448
        %s450 = sand.u32 %s67, 1
        %s451 = smul.addr %s450, 32
        %s452 = scalar_lea.vmem [#allocation2], %s451
        %p453 = pneg %p80
        %p454 = pneg %p77
        %s455 = smul.u32 4, %s33
        %p456 = scmp.lt.s32.totalorder %s455, 7
        %s457 = scalar_select %p456, %s455, 7
        %s458 = smul.addr %s457, 8
        %s459 = scalar_lea.vmem %s2, %s458
        %p460 = pneg %p106
        %p461 = pneg %p103
        %s462 = smul.u32 4, %s33
        %p463 = scmp.lt.s32.totalorder %s462, 7
        %s464 = scalar_select %p463, %s462, 7
        %s465 = smul.addr %s464, 4
        %s466 = scalar_lea.vmem %s3, %s465
        %p467 = pneg %p132
        %p468 = pneg %p129
        %p469 = pneg %p153
        %p470 = pneg %p150
        %p471 = pneg %p174
        %p472 = pneg %p171
        %p473 = pneg %p195
        %p474 = pneg %p192
        %p475 = pneg %p216
        %p476 = pneg %p213
        %p477 = pneg %p237
        %p478 = pneg %p234
        %p479 = pneg %p263
        %p480 = pneg %p260
        %s481 = sand.u32 %s250, 1
        %s482 = scalar_lea.sflag [#allocation4], %s481
        %s483 = sand.u32 %s250, 1
        %s484 = smul.addr %s483, 32
        %s485 = scalar_lea.vmem [#allocation8], %s484
        %p486 = pneg %p289
        %p487 = pneg %p286
        %s488 = sand.u32 %s33, 1
        %s489 = scalar_lea.sflag [#allocation10], %s488
        %s490 = sand.u32 %s276, 1
        %s491 = smul.addr %s490, 32
        %s492 = scalar_lea.vmem [#allocation9], %s491
        %p493 = pneg %p315
        %p494 = pneg %p312
        %s495 = sand.u32 %s33, 1
        %s496 = scalar_lea.sflag [#allocation10], %s495
        %s497 = sand.u32 %s302, 1
        %s498 = scalar_lea.vmem [#allocation11], %s497
        %s499 = smul.u32 4, %s33
        %p500 = scmp.lt.s32.totalorder %s499, 7
        %s501 = scalar_select %p500, %s499, 7
        %s502 = smul.addr %s501, 8
        %s503 = scalar_lea.vmem %s0, %s502
        %s504 = smul.u32 4, %s33
        %s505 = smul.u32 4, %s33
        %s506 = smul.u32 4, %s33
        %p507 = scmp.lt.s32.totalorder %s506, 7
        %s508 = scalar_select %p507, %s506, 7
        %s509 = smul.addr %s508, 8
        %s510 = scalar_lea.vmem %s2, %s509
        %s511 = smul.u32 4, %s33
        %s512 = smul.u32 4, %s33
        %p513 = scmp.lt.s32.totalorder %s512, 7
        %s514 = scalar_select %p513, %s512, 7
        %s515 = smul.addr %s514, 4
        %s516 = scalar_lea.vmem %s3, %s515
        %s517 = smul.u32 4, %s33
        %s518 = smul.u32 4, %s33
        %s519 = smul.u32 4, %s33
        %v521 = vld [vmem:[%s503] sm:$0xff]
        %v522 = vld [vmem:[%s503 + $0x8] sm:$0xff]
        %v523 = vld [vmem:[%s503 + $0x10] sm:$0xff]
        %v524 = vld [vmem:[%s503 + $0x18] sm:$0xff]
        %v525 = vld [vmem:[%s510] sm:$0xff]
        %v526 = vld [vmem:[%s510 + $0x8] sm:$0xff]
        %v527 = vld [vmem:[%s510 + $0x10] sm:$0xff]
        %v528 = vld [vmem:[%s510 + $0x18] sm:$0xff]
        %530 = vset.pattern.permute.xlu0 0
        %531 = vperm.xlu0 %530, %v525
        %v532 = vpop.permute.xlu0 %531
        %535 = vset.pattern.permute.xlu0 0
        %536 = vperm.xlu0 %535, %v526
        %v537 = vpop.permute.xlu0 %536
        %540 = vset.pattern.permute.xlu0 0
        %541 = vperm.xlu0 %540, %v527
        %v542 = vpop.permute.xlu0 %541
        %545 = vset.pattern.permute.xlu0 0
        %546 = vperm.xlu0 %545, %v528
        %v547 = vpop.permute.xlu0 %546
        %v549 = vmul.f32 %v532, %v521
        %v550 = vmul.f32 %v537, %v522
        %v551 = vmul.f32 %v542, %v523
        %v552 = vmul.f32 %v547, %v524
        %v553 = vld [vmem:[%s428] sm:$0xff]
        %v554 = vld [vmem:[%s428 + $0x8] sm:$0xff]
        %v555 = vld [vmem:[%s428 + $0x10] sm:$0xff]
        %v556 = vld [vmem:[%s428 + $0x18] sm:$0xff]
        %557 = vset.pattern.permute.xlu0 1
        %558 = vperm.xlu0 %557, %v525
        %v559 = vpop.permute.xlu0 %558
        %561 = vset.pattern.permute.xlu0 1
        %562 = vperm.xlu0 %561, %v526
        %v563 = vpop.permute.xlu0 %562
        %565 = vset.pattern.permute.xlu0 1
        %566 = vperm.xlu0 %565, %v527
        %v567 = vpop.permute.xlu0 %566
        %569 = vset.pattern.permute.xlu0 1
        %570 = vperm.xlu0 %569, %v528
        %v571 = vpop.permute.xlu0 %570
        %v573 = vmul.f32 %v559, %v553
        %v574 = vmul.f32 %v563, %v554
        %v575 = vmul.f32 %v567, %v555
        %v576 = vmul.f32 %v571, %v556
        %v577 = vadd.f32 %v549, %v573
        %v578 = vadd.f32 %v550, %v574
        %v579 = vadd.f32 %v551, %v575
        %v580 = vadd.f32 %v552, %v576
        %581 = vst [vmem:[%s485] sm:$0xff] %v577
        %582 = vst [vmem:[%s485 + $0x8] sm:$0xff] %v578
        %583 = vst [vmem:[%s485 + $0x10] sm:$0xff] %v579
        %584 = vst [vmem:[%s485 + $0x18] sm:$0xff] %v580
        %v585 = vld [vmem:[%s516] sm:$0xf]
        %v586 = vld [vmem:[%s516 + $0x4] sm:$0xf]
        %v587 = vld [vmem:[%s516 + $0x8] sm:$0xf]
        %v588 = vld [vmem:[%s516 + $0xc] sm:$0xf]
        %v589 = vld [vmem:[#allocation5] sm:$0xf]
        %v590 = vld [vmem:[#allocation5 + $0x4] sm:$0xf]
        %v591 = vld [vmem:[#allocation5 + $0x8] sm:$0xf]
        %v592 = vld [vmem:[#allocation5 + $0xc] sm:$0xf]
        %v593 = vld [vmem:[%s6] sm:$0x1]
        %v595 = vlaneseq
        %v596 = vshrl.u32 %v595, 7
        %v597 = vsub.s32 0, %v596
        %v598 = vrot.slane %v593, %v597
        %v604 = vunpack.c.l.b16 %v585
        %v605 = vunpack.c.l.b16 %v586
        %v606 = vunpack.c.l.b16 %v587
        %v607 = vunpack.c.l.b16 %v588
        %v608 = vpack.c.b16 %v605, %v604
        %v609 = vpack.c.b16 %v607, %v606
        %v614 = vunpack.c.l.b16 %v589
        %v615 = vunpack.c.l.b16 %v590
        %v616 = vunpack.c.l.b16 %v591
        %v617 = vunpack.c.l.b16 %v592
        %v618 = vpack.c.b16 %v615, %v614
        %v619 = vpack.c.b16 %v617, %v616
        %vm622 = vcmask 261120
        %v624 = vsel %vm622, %v608, 0
        %v627 = vsel %vm622, %v609, 0
        %629 = vmatprep.subr.bf16.mxu0 0
        %630 = vmatpush1.bf16.msra.mxu0 %v618
        %631 = vmatprep.subr.bf16.mxu0 0
        %632 = vmatpush1.bf16.msra.mxu0 %v619
        %633 = vmatprep.subr.bf16.mxu0 0
        %634 = vmatpush1.bf16.msra.mxu0 0
        %635 = vmatprep.subr.bf16.mxu0 0
        %636 = vmatpush1.bf16.msra.mxu0 0
        %637 = vmatprep.subr.bf16.mxu0 0
        %638 = vmatpush1.bf16.msra.mxu0 0
        %639 = vmatprep.subr.bf16.mxu0 0
        %640 = vmatpush1.bf16.msra.mxu0 0
        %641 = vmatprep.subr.bf16.mxu0 0
        %642 = vmatpush1.bf16.msra.mxu0 0
        %643 = vmatprep.subr.bf16.mxu0 0
        %644 = vmatpush1.bf16.msra.mxu0 0
        %645 = vmatprep.subr.bf16.mxu0 0
        %646 = vmatpush1.bf16.msra.mxu0 0
        %647 = vmatprep.subr.bf16.mxu0 0
        %648 = vmatpush1.bf16.msra.mxu0 0
        %649 = vmatprep.subr.bf16.mxu0 0
        %650 = vmatpush1.bf16.msra.mxu0 0
        %651 = vmatprep.subr.bf16.mxu0 0
        %652 = vmatpush1.bf16.msra.mxu0 0
        %653 = vmatprep.subr.bf16.mxu0 0
        %654 = vmatpush1.bf16.msra.mxu0 0
        %655 = vmatprep.subr.bf16.mxu0 0
        %656 = vmatpush1.bf16.msra.mxu0 0
        %657 = vmatprep.subr.bf16.mxu0 0
        %658 = vmatpush1.bf16.msra.mxu0 0
        %659 = vmatprep.subr.bf16.mxu0 0
        %660 = vmatpush1.bf16.msra.mxu0 0
        %661 = vmatprep.mubr.bf16.mxu0 0
        %662 = vmatmul.mubr.bf16.gmra.mrb[0].mxu0 %v624
        %v663 = vpop.f32.mrb[0].mxu0
        %v664 = vadd.f32 %v598, %v663
        %v665 = vpop.f32.mrb[0].mxu0
        %v666 = vpop.f32.mrb[0].mxu0
        %v667 = vadd.f32 %v598, %v666
        %v668 = vpop.f32.mrb[0].mxu0
        %669 = vmatprep.mubr.bf16.mxu0 0
        %670 = vmatmul.mubr.bf16.gmra.mrb[0].mxu0 %v627
        %v671 = vpop.f32.mrb[0].mxu0
        %v672 = vadd.f32 %v598, %v671
        %v673 = vpop.f32.mrb[0].mxu0
        %v674 = vpop.f32.mrb[0].mxu0
        %v675 = vadd.f32 %v598, %v674
        %v676 = vpop.f32.mrb[0].mxu0
        %677 = vdwg.mxu0
        %v678 = vpack.c.bf16 %v578, %v577
        %v679 = vpack.c.bf16 %v580, %v579
        %v680 = vld [vmem:[%s4] sm:$0xf]
        %v681 = vld [vmem:[%s4 + $0x4] sm:$0xf]
        %v682 = vld [vmem:[%s4 + $0x8] sm:$0xf]
        %v683 = vld [vmem:[%s4 + $0xc] sm:$0xf]
        %v684 = vld [vmem:[%s4 + $0x10] sm:$0xf]
        %v685 = vld [vmem:[%s4 + $0x14] sm:$0xf]
        %v686 = vld [vmem:[%s4 + $0x18] sm:$0xf]
        %v687 = vld [vmem:[%s4 + $0x1c] sm:$0xf]
        %v688 = vld [vmem:[%s4 + $0x20] sm:$0xf]
        %v689 = vld [vmem:[%s4 + $0x24] sm:$0xf]
        %v690 = vld [vmem:[%s4 + $0x28] sm:$0xf]
        %v691 = vld [vmem:[%s4 + $0x2c] sm:$0xf]
        %v692 = vld [vmem:[%s4 + $0x30] sm:$0xf]
        %v693 = vld [vmem:[%s4 + $0x34] sm:$0xf]
        %v694 = vld [vmem:[%s4 + $0x38] sm:$0xf]
        %v695 = vld [vmem:[%s4 + $0x3c] sm:$0xf]
        %v712 = vunpack.c.l.b16 %v680
        %v713 = vunpack.c.l.b16 %v681
        %v714 = vunpack.c.l.b16 %v682
        %v715 = vunpack.c.l.b16 %v683
        %v716 = vunpack.c.l.b16 %v684
        %v717 = vunpack.c.l.b16 %v685
        %v718 = vunpack.c.l.b16 %v686
        %v719 = vunpack.c.l.b16 %v687
        %v720 = vunpack.c.l.b16 %v688
        %v721 = vunpack.c.l.b16 %v689
        %v722 = vunpack.c.l.b16 %v690
        %v723 = vunpack.c.l.b16 %v691
        %v724 = vunpack.c.l.b16 %v692
        %v725 = vunpack.c.l.b16 %v693
        %v726 = vunpack.c.l.b16 %v694
        %v727 = vunpack.c.l.b16 %v695
        %v728 = vpack.c.b16 %v713, %v712
        %v729 = vpack.c.b16 %v715, %v714
        %v730 = vpack.c.b16 %v717, %v716
        %v731 = vpack.c.b16 %v719, %v718
        %v732 = vpack.c.b16 %v721, %v720
        %v733 = vpack.c.b16 %v723, %v722
        %v734 = vpack.c.b16 %v725, %v724
        %v735 = vpack.c.b16 %v727, %v726
        %744 = vmatprep.subr.bf16.mxu0 0
        %745 = vmatpush1.bf16.msra.mxu0 %v728
        %746 = vmatprep.subr.bf16.mxu0 0
        %747 = vmatpush1.bf16.msra.mxu0 %v729
        %748 = vmatprep.subr.bf16.mxu0 0
        %749 = vmatpush1.bf16.msra.mxu0 %v730
        %750 = vmatprep.subr.bf16.mxu0 0
        %751 = vmatpush1.bf16.msra.mxu0 %v731
        %752 = vmatprep.subr.bf16.mxu0 0
        %753 = vmatpush1.bf16.msra.mxu0 %v732
        %754 = vmatprep.subr.bf16.mxu0 0
        %755 = vmatpush1.bf16.msra.mxu0 %v733
        %756 = vmatprep.subr.bf16.mxu0 0
        %757 = vmatpush1.bf16.msra.mxu0 %v734
        %758 = vmatprep.subr.bf16.mxu0 0
        %759 = vmatpush1.bf16.msra.mxu0 %v735
        %760 = vmatprep.subr.bf16.mxu0 0
        %761 = vmatpush1.bf16.msra.mxu0 0
        %762 = vmatprep.subr.bf16.mxu0 0
        %763 = vmatpush1.bf16.msra.mxu0 0
        %764 = vmatprep.subr.bf16.mxu0 0
        %765 = vmatpush1.bf16.msra.mxu0 0
        %766 = vmatprep.subr.bf16.mxu0 0
        %767 = vmatpush1.bf16.msra.mxu0 0
        %768 = vmatprep.subr.bf16.mxu0 0
        %769 = vmatpush1.bf16.msra.mxu0 0
        %770 = vmatprep.subr.bf16.mxu0 0
        %771 = vmatpush1.bf16.msra.mxu0 0
        %772 = vmatprep.subr.bf16.mxu0 0
        %773 = vmatpush1.bf16.msra.mxu0 0
        %774 = vmatprep.subr.bf16.mxu0 0
        %775 = vmatpush1.bf16.msra.mxu0 0
        %776 = vmatprep.mubr.bf16.mxu0 0
        %777 = vmatmul.mubr.bf16.gmra.mrb[0].mxu0 %v678
        %v778 = vpop.f32.mrb[0].mxu0
        %v779 = vadd.f32 %v664, %v778
        %v780 = vpop.f32.mrb[0].mxu0
        %v781 = vpop.f32.mrb[0].mxu0
        %v782 = vadd.f32 %v667, %v781
        %v783 = vpop.f32.mrb[0].mxu0
        %784 = vmatprep.mubr.bf16.mxu0 0
        %785 = vmatmul.mubr.bf16.gmra.mrb[0].mxu0 %v679
        %v786 = vpop.f32.mrb[0].mxu0
        %v787 = vadd.f32 %v672, %v786
        %v788 = vpop.f32.mrb[0].mxu0
        %v789 = vpop.f32.mrb[0].mxu0
        %v790 = vadd.f32 %v675, %v789
        %v791 = vpop.f32.mrb[0].mxu0
        %792 = vdwg.mxu0
        %v793 = vmax.f32 %v779, 0.0
        %v794 = vmax.f32 %v782, 0.0
        %v795 = vmax.f32 %v787, 0.0
        %v796 = vmax.f32 %v790, 0.0
        %v797 = vpack.c.bf16 %v794, %v793
        %v798 = vpack.c.bf16 %v796, %v795
        %v799 = vld [vmem:[#allocation7] sm:$0xf]
        %v800 = vld [vmem:[#allocation7 + $0x4] sm:$0xf]
        %v801 = vld [vmem:[#allocation7 + $0x8] sm:$0xf]
        %v802 = vld [vmem:[#allocation7 + $0xc] sm:$0xf]
        %v803 = vld [vmem:[#allocation7 + $0x10] sm:$0xf]
        %v804 = vld [vmem:[#allocation7 + $0x14] sm:$0xf]
        %v805 = vld [vmem:[#allocation7 + $0x18] sm:$0xf]
        %v806 = vld [vmem:[#allocation7 + $0x1c] sm:$0xf]
        %v807 = vld [vmem:[#allocation7 + $0x20] sm:$0xf]
        %v808 = vld [vmem:[#allocation7 + $0x24] sm:$0xf]
        %v809 = vld [vmem:[#allocation7 + $0x28] sm:$0xf]
        %v810 = vld [vmem:[#allocation7 + $0x2c] sm:$0xf]
        %v811 = vld [vmem:[#allocation7 + $0x30] sm:$0xf]
        %v812 = vld [vmem:[#allocation7 + $0x34] sm:$0xf]
        %v813 = vld [vmem:[#allocation7 + $0x38] sm:$0xf]
        %v814 = vld [vmem:[#allocation7 + $0x3c] sm:$0xf]
        %v815 = vld [vmem:[%s8] sm:$0x1]
        %v817 = vlaneseq
        %v818 = vshrl.u32 %v817, 7
        %v819 = vsub.s32 0, %v818
        %v820 = vrot.slane %v815, %v819
        %v838 = vunpack.c.l.b16 %v799
        %v839 = vunpack.c.l.b16 %v800
        %v840 = vunpack.c.l.b16 %v801
        %v841 = vunpack.c.l.b16 %v802
        %v842 = vunpack.c.l.b16 %v803
        %v843 = vunpack.c.l.b16 %v804
        %v844 = vunpack.c.l.b16 %v805
        %v845 = vunpack.c.l.b16 %v806
        %v846 = vunpack.c.l.b16 %v807
        %v847 = vunpack.c.l.b16 %v808
        %v848 = vunpack.c.l.b16 %v809
        %v849 = vunpack.c.l.b16 %v810
        %v850 = vunpack.c.l.b16 %v811
        %v851 = vunpack.c.l.b16 %v812
        %v852 = vunpack.c.l.b16 %v813
        %v853 = vunpack.c.l.b16 %v814
        %v854 = vpack.c.b16 %v839, %v838
        %v855 = vpack.c.b16 %v841, %v840
        %v856 = vpack.c.b16 %v843, %v842
        %v857 = vpack.c.b16 %v845, %v844
        %v858 = vpack.c.b16 %v847, %v846
        %v859 = vpack.c.b16 %v849, %v848
        %v860 = vpack.c.b16 %v851, %v850
        %v861 = vpack.c.b16 %v853, %v852
        %870 = vmatprep.subr.bf16.mxu0 0
        %871 = vmatpush1.bf16.msra.mxu0 %v854
        %872 = vmatprep.subr.bf16.mxu0 0
        %873 = vmatpush1.bf16.msra.mxu0 %v855
        %874 = vmatprep.subr.bf16.mxu0 0
        %875 = vmatpush1.bf16.msra.mxu0 %v856
        %876 = vmatprep.subr.bf16.mxu0 0
        %877 = vmatpush1.bf16.msra.mxu0 %v857
        %878 = vmatprep.subr.bf16.mxu0 0
        %879 = vmatpush1.bf16.msra.mxu0 %v858
        %880 = vmatprep.subr.bf16.mxu0 0
        %881 = vmatpush1.bf16.msra.mxu0 %v859
        %882 = vmatprep.subr.bf16.mxu0 0
        %883 = vmatpush1.bf16.msra.mxu0 %v860
        %884 = vmatprep.subr.bf16.mxu0 0
        %885 = vmatpush1.bf16.msra.mxu0 %v861
        %886 = vmatprep.subr.bf16.mxu0 0
        %887 = vmatpush1.bf16.msra.mxu0 0
        %888 = vmatprep.subr.bf16.mxu0 0
        %889 = vmatpush1.bf16.msra.mxu0 0
        %890 = vmatprep.subr.bf16.mxu0 0
        %891 = vmatpush1.bf16.msra.mxu0 0
        %892 = vmatprep.subr.bf16.mxu0 0
        %893 = vmatpush1.bf16.msra.mxu0 0
        %894 = vmatprep.subr.bf16.mxu0 0
        %895 = vmatpush1.bf16.msra.mxu0 0
        %896 = vmatprep.subr.bf16.mxu0 0
        %897 = vmatpush1.bf16.msra.mxu0 0
        %898 = vmatprep.subr.bf16.mxu0 0
        %899 = vmatpush1.bf16.msra.mxu0 0
        %900 = vmatprep.subr.bf16.mxu0 0
        %901 = vmatpush1.bf16.msra.mxu0 0
        %902 = vmatprep.mubr.bf16.mxu0 0
        %903 = vmatmul.mubr.bf16.gmra.mrb[0].mxu0 %v797
        %v904 = vpop.f32.mrb[0].mxu0
        %v905 = vadd.f32 %v820, %v904
        %v906 = vpop.f32.mrb[0].mxu0
        %v907 = vpop.f32.mrb[0].mxu0
        %v908 = vadd.f32 %v820, %v907
        %v909 = vpop.f32.mrb[0].mxu0
        %910 = vmatprep.mubr.bf16.mxu0 0
        %911 = vmatmul.mubr.bf16.gmra.mrb[0].mxu0 %v798
        %v912 = vpop.f32.mrb[0].mxu0
        %v913 = vadd.f32 %v820, %v912
        %v914 = vpop.f32.mrb[0].mxu0
        %v915 = vpop.f32.mrb[0].mxu0
        %v916 = vadd.f32 %v820, %v915
        %v917 = vpop.f32.mrb[0].mxu0
        %918 = vdwg.mxu0
        %v919 = vsub.f32 %v905, %v521
        %v920 = vsub.f32 %v908, %v522
        %v921 = vsub.f32 %v913, %v523
        %v922 = vsub.f32 %v916, %v524
        %v923 = vmul.f32 %v919, %v919
        %v924 = vmul.f32 %v920, %v920
        %v925 = vmul.f32 %v921, %v921
        %v926 = vmul.f32 %v922, %v922
        %927 = vset.pattern.permute.xlu0 2
        %928 = vperm.xlu0 %927, %v525
        %v929 = vpop.permute.xlu0 %928
        %931 = vset.pattern.permute.xlu0 2
        %932 = vperm.xlu0 %931, %v526
        %v933 = vpop.permute.xlu0 %932
        %935 = vset.pattern.permute.xlu0 2
        %936 = vperm.xlu0 %935, %v527
        %v937 = vpop.permute.xlu0 %936
        %939 = vset.pattern.permute.xlu0 2
        %940 = vperm.xlu0 %939, %v528
        %v941 = vpop.permute.xlu0 %940
        %v943 = vmul.f32 %v923, %v929
        %v944 = vmul.f32 %v924, %v933
        %v945 = vmul.f32 %v925, %v937
        %v946 = vmul.f32 %v926, %v941
        %947 = vmatprep.subr.mxu0 0.0
        %948 = vmatpush1.xpose.msra.mxu0 %v943
        %949 = vmatprep.subr.mxu0 0.0
        %950 = vmatpush1.xpose.msra.mxu0 %v944
        %951 = vmatprep.subr.mxu0 0.0
        %952 = vmatpush1.xpose.msra.mxu0 %v945
        %953 = vmatprep.subr.mxu0 0.0
        %954 = vmatpush1.xpose.msra.mxu0 %v946
        %955 = vmatprep.subr.mxu0 0.0
        %956 = vmatpush1.xpose.msra.mxu0 0.0
        %957 = vmatprep.subr.mxu0 0.0
        %958 = vmatpush1.xpose.msra.mxu0 0.0
        %959 = vmatprep.subr.mxu0 0.0
        %960 = vmatpush1.xpose.msra.mxu0 0.0
        %961 = vmatprep.subr.mxu0 0.0
        %962 = vmatpush1.xpose.msra.mxu0 0.0
        %963 = vmatprep.subr.mxu0 0.0
        %964 = vmatpush1.xpose.msra.mxu0 0.0
        %965 = vmatprep.subr.mxu0 0.0
        %966 = vmatpush1.xpose.msra.mxu0 0.0
        %967 = vmatprep.subr.mxu0 0.0
        %968 = vmatpush1.xpose.msra.mxu0 0.0
        %969 = vmatprep.subr.mxu0 0.0
        %970 = vmatpush1.xpose.msra.mxu0 0.0
        %971 = vmatprep.subr.mxu0 0.0
        %972 = vmatpush1.xpose.msra.mxu0 0.0
        %973 = vmatprep.subr.mxu0 0.0
        %974 = vmatpush1.xpose.msra.mxu0 0.0
        %975 = vmatprep.subr.mxu0 0.0
        %976 = vmatpush1.xpose.msra.mxu0 0.0
        %977 = vmatprep.subr.mxu0 0.0
        %978 = vmatpush1.xpose.msra.mxu0 0.0
        %979 = vmatprep.subr.mxu0 0.0
        %980 = vmatpush1.xpose.msra.mxu0 0.0
        %981 = vmatprep.subr.mxu0 0.0
        %982 = vmatpush1.xpose.msra.mxu0 0.0
        %983 = vmatprep.subr.mxu0 0.0
        %984 = vmatpush1.xpose.msra.mxu0 0.0
        %985 = vmatprep.subr.mxu0 0.0
        %986 = vmatpush1.xpose.msra.mxu0 0.0
        %987 = vmatprep.subr.mxu0 0.0
        %988 = vmatpush1.xpose.msra.mxu0 0.0
        %989 = vmatprep.subr.mxu0 0.0
        %990 = vmatpush1.xpose.msra.mxu0 0.0
        %991 = vmatprep.subr.mxu0 0.0
        %992 = vmatpush1.xpose.msra.mxu0 0.0
        %993 = vmatprep.subr.mxu0 0.0
        %994 = vmatpush1.xpose.msra.mxu0 0.0
        %995 = vmatprep.subr.mxu0 0.0
        %996 = vmatpush1.xpose.msra.mxu0 0.0
        %997 = vmatprep.subr.mxu0 0.0
        %998 = vmatpush1.xpose.msra.mxu0 0.0
        %999 = vmatprep.subr.mxu0 0.0
        %1000 = vmatpush1.xpose.msra.mxu0 0.0
        %1001 = vmatprep.subr.mxu0 0.0
        %1002 = vmatpush1.xpose.msra.mxu0 0.0
        %1003 = vmatprep.subr.mxu0 0.0
        %1004 = vmatpush1.xpose.msra.mxu0 0.0
        %1005 = vmatprep.subr.mxu0 0.0
        %1006 = vmatpush1.xpose.msra.mxu0 0.0
        %1007 = vmatprep.subr.mxu0 0.0
        %1008 = vmatpush1.xpose.msra.mxu0 0.0
        %1009 = vmatprep.subr.mxu0 0.0
        %1010 = vmatpush1.xpose.msra.mxu0 0.0
        %1011 = vmatprep.mubr.f32.mxu0 0.0
        %1012 = vmatmul.mubr.f32.gmra.mrb[0].mxu0 1.0
        %v1013 = vpop.f32.mrb[0].mxu0
        %v1014 = vadd.f32 0.0, %v1013
        %v1015 = vpop.f32.mrb[0].mxu0
        %1016 = vdwg.mxu0
        %v1017 = vmul.f32 %v1014, 0.0078125
        %1018 = vst [vmem:[%s492] sm:$0xff] %v905
        %1019 = vst [vmem:[%s492 + $0x8] sm:$0xff] %v908
        %1020 = vst [vmem:[%s492 + $0x10] sm:$0xff] %v913
        %1021 = vst [vmem:[%s492 + $0x18] sm:$0xff] %v916
        %vm1022 = vcmask 253952
        %1023 = vst.msk [vmem:[%s498] sm:$0x1] %vm1022, %v1017
        %s1024 = sand.u32 %s250, 1
        %s1025 = scalar_lea.sflag [#allocation4], %s1024
        %s1026 = sand.u32 %s250, 1
        %s1027 = smul.addr %s1026, 32
        %s1028 = scalar_lea.vmem [#allocation8], %s1027
        %s1029 = sand.u32 %s33, 1
        %s1030 = scalar_lea.sflag [#allocation10], %s1029
        %s1031 = sand.u32 %s276, 1
        %s1032 = smul.addr %s1031, 32
        %s1033 = scalar_lea.vmem [#allocation9], %s1032
        %s1034 = sand.u32 %s33, 1
        %s1035 = scalar_lea.sflag [#allocation10], %s1034
        %s1036 = sand.u32 %s302, 1
        %s1037 = scalar_lea.vmem [#allocation11], %s1036
        // Predicated region
        $region69: #{tpu_custom_call.1} parent=55 // pred_check
          %p1038 = pneg %p260
        $region70: #{tpu_custom_call.1} parent=55 // pred_check_branch
          %1040 = sbr.rel (%p1038) target = $region72
        $region71: #{tpu_custom_call.1} parent=55 // pred_region
          %s1041 = smul.u32 4, %s33
          %s1043 = ssub.s32 512, 512
          %1044 = vsyncadd %s1025, %s1043
          %s1045 = smul.addr %s1041, 128
          %s1046 = scalar_lea.hbm %s9, %s1045
          %s1047 = sshll.u32 %s1028, 4
          %s1048 = int_to_ptr.vmem [resolvable:$true] %s1047
          %1053 = dma.vmem_to_hbm [thread:$0]  %s1048, 512, %s1046, %s1025, 128, 128, 8
        $region72: #{tpu_custom_call.1} parent=55 // pred_fallthru
          _
        // Predicated region
        $region73: #{tpu_custom_call.1} parent=55 // pred_check
          %p1054 = pneg %p286
        $region74: #{tpu_custom_call.1} parent=55 // pred_check_branch
          %1056 = sbr.rel (%p1054) target = $region76
        $region75: #{tpu_custom_call.1} parent=55 // pred_region
          %s1057 = smul.u32 4, %s33
          %s1059 = ssub.s32 512, 512
          %1060 = vsyncadd %s1030, %s1059
          %s1061 = smul.addr %s1057, 128
          %s1062 = scalar_lea.hbm %s10, %s1061
          %s1063 = sshll.u32 %s1033, 4
          %s1064 = int_to_ptr.vmem [resolvable:$true] %s1063
          %1069 = dma.vmem_to_hbm [thread:$0]  %s1064, 512, %s1062, %s1030, 128, 128, 8
        $region76: #{tpu_custom_call.1} parent=55 // pred_fallthru
          _
        // Predicated region
        $region77: #{tpu_custom_call.1} parent=55 // pred_check
          %p1070 = pneg %p312
        $region78: #{tpu_custom_call.1} parent=55 // pred_check_branch
          %1072 = sbr.rel (%p1070) target = $region80
        $region79: #{tpu_custom_call.1} parent=55 // pred_region
          %s1074 = ssub.s32 16, 16
          %1075 = vsyncadd %s1035, %s1074
          %s1076 = smul.addr %s33, 16
          %s1077 = scalar_lea.hbm %s11, %s1076
          %s1079 = sshll.u32 %s1037, 4
          %s1080 = int_to_ptr.vmem [resolvable:$true] %s1079
          %1082 = dma.vmem_to_hbm [thread:$0]  %s1080, 16, %s1077, %s1035
        $region80: #{tpu_custom_call.1} parent=55 // pred_fallthru
          _
      $region56: #{tpu_custom_call.1} parent=5 // pred_fallthru
        _
      %p1083 = scmp.le.s32.totalorder 2, %s28
      // Predicated region
      $region81: #{tpu_custom_call.1} parent=5 // pred_check
        %p1084 = pneg %p1083
      $region82: #{tpu_custom_call.1} parent=5 // pred_check_branch
        %1086 = sbr.rel (%p1084) target = $region84
      $region83: #{tpu_custom_call.1} parent=5 // pred_region
        %s1087 = ssub.s32 %s28, 2
        // Predicated region
        $region85: #{tpu_custom_call.1} parent=83 // pred_check
          %p1088 = pneg %p266
        $region86: #{tpu_custom_call.1} parent=83 // pred_check_branch
          %1090 = sbr.rel (%p1088) target = $region88
        $region87: #{tpu_custom_call.1} parent=83 // pred_region
          %s1091 = sand.u32 %s251, 1
          %s1092 = scalar_lea.sflag [#allocation4], %s1091
          %s1093 = sand.u32 %s251, 1
          %s1094 = smul.addr %s1093, 32
          %s1095 = scalar_lea.vmem [#allocation8], %s1094
          %1096 = dma.done %s1092, 512
        $region88: #{tpu_custom_call.1} parent=83 // pred_fallthru
          _
        // Predicated region
        $region89: #{tpu_custom_call.1} parent=83 // pred_check
          %p1097 = pneg %p292
        $region90: #{tpu_custom_call.1} parent=83 // pred_check_branch
          %1099 = sbr.rel (%p1097) target = $region92
        $region91: #{tpu_custom_call.1} parent=83 // pred_region
          %s1100 = sand.u32 %s34, 1
          %s1101 = scalar_lea.sflag [#allocation10], %s1100
          %s1102 = sand.u32 %s277, 1
          %s1103 = smul.addr %s1102, 32
          %s1104 = scalar_lea.vmem [#allocation9], %s1103
          %1105 = dma.done %s1101, 512
        $region92: #{tpu_custom_call.1} parent=83 // pred_fallthru
          _
        // Predicated region
        $region93: #{tpu_custom_call.1} parent=83 // pred_check
          %p1106 = pneg %p318
        $region94: #{tpu_custom_call.1} parent=83 // pred_check_branch
          %1108 = sbr.rel (%p1106) target = $region96
        $region95: #{tpu_custom_call.1} parent=83 // pred_region
          %s1109 = sand.u32 %s34, 1
          %s1110 = scalar_lea.sflag [#allocation10], %s1109
          %s1111 = sand.u32 %s303, 1
          %s1112 = scalar_lea.vmem [#allocation11], %s1111
          %1113 = dma.done %s1110, 16
        $region96: #{tpu_custom_call.1} parent=83 // pred_fallthru
          _
      $region84: #{tpu_custom_call.1} parent=5 // pred_fallthru
        _
    $region6: #{tpu_custom_call.1} parent=1 // loop_footer
      %s32 = sadd.s32 1, %s28
    $region7: #{tpu_custom_call.1} parent=1 // loop_footer_branch
      %27 = sbr.rel target = $region3
    $region8: #{tpu_custom_call.1} parent=1 // loop_exit
      _
    %1114 = vsyncpa [#allocation3], 1
    %s1115 = scalar_lea.sflag [#allocation3], 1
    %1116 = vsyncpa %s1115, 1
    %1117 = vsyncpa [#allocation6], 1
    %1118 = vsyncpa [#allocation4], 1
    %s1119 = scalar_lea.sflag [#allocation4], 1
    %1120 = vsyncpa %s1119, 1
    %1121 = vsyncpa [#allocation10], 1
    %s1122 = scalar_lea.sflag [#allocation10], 1
    %1123 = vsyncpa %s1122, 1

</llo_original>
